<compile_context>
chip_gen: v7x
topology: tpu7x:2x2x1
jax: 0.10.0
libtpu: 0.0.40
codegen_flags: <defaults>
</compile_context>

<pallas_src>
import functools

import jax
import jax.numpy as jnp
from jax.experimental import pallas as pl
from jax.experimental.pallas import tpu as pltpu

_LANE = 128  # lane width (elements) = HBM/VMEM tile boundary on the last dim


# ----------------------------------------------------------------------------
# Fast path: direct HBM->HBM DMAs (aligned seam).
# ----------------------------------------------------------------------------
def _cat_dma_kernel(x1_ref, x2_ref, o_ref, sem, *, m1, m2, row_chunks):
    # x1_ref: (N, M1) HBM ; x2_ref: (N, M2) HBM ; o_ref: (N, M1+M2) HBM.
    # row_chunks: static tuple of (row_start, n_rows); starts are tile-aligned.
    copies = []
    for c, (r0, rows) in enumerate(row_chunks):
        copies.append(
            pltpu.make_async_copy(
                x1_ref.at[pl.ds(r0, rows), pl.ds(0, m1)],
                o_ref.at[pl.ds(r0, rows), pl.ds(0, m1)],
                sem.at[0, c],
            )
        )
        copies.append(
            pltpu.make_async_copy(
                x2_ref.at[pl.ds(r0, rows), pl.ds(0, m2)],
                o_ref.at[pl.ds(r0, rows), pl.ds(m1, m2)],
                sem.at[1, c],
            )
        )
    # Issue everything (all copies overlap), then wait for completion.
    for cp in copies:
        cp.start()
    for cp in copies:
        cp.wait()


def _row_chunks(n, row_align, max_chunks):
    """Split n rows into <= max_chunks chunks whose starts are row_align-aligned."""
    groups = n // row_align
    k = max(1, min(max_chunks, groups))
    if k <= 1:
        return ((0, n),)
    base, rem = divmod(groups, k)
    chunks = []
    start = 0
    for i in range(k):
        rows = (base + (1 if i < rem else 0)) * row_align
        if i == k - 1:
            rows = n - start  # last chunk absorbs any ragged tail rows
        chunks.append((start, rows))
        start += rows
    return tuple(chunks)


def _cat_dma(x1f, x2f, m1, m2, mtot, n, dtype, itemsize, dma_chunks, cost):
    # Sublane packing of the (8,128) tile: 8 rows for 32-bit, 16 for 16-bit,
    # 32 for 8-bit.  Chunk starts aligned to this so concurrent DMAs never
    # touch the same output HBM tile.
    row_align = 8 * max(1, 4 // itemsize)
    chunks = _row_chunks(n, row_align, dma_chunks)
    kernel = functools.partial(_cat_dma_kernel, m1=m1, m2=m2, row_chunks=chunks)
    return pl.pallas_call(
        kernel,
        out_shape=jax.ShapeDtypeStruct((n, mtot), dtype),
        in_specs=[
            pl.BlockSpec(memory_space=pl.ANY),
            pl.BlockSpec(memory_space=pl.ANY),
        ],
        out_specs=pl.BlockSpec(memory_space=pl.ANY),
        scratch_shapes=[pltpu.SemaphoreType.DMA((2, len(chunks)))],
        cost_estimate=cost,
        compiler_params=pltpu.CompilerParams(has_side_effects=True),
    )(x1f, x2f)


# ----------------------------------------------------------------------------
# Fallback: VMEM-staged tiled copy (lane-unaligned seam).
# ----------------------------------------------------------------------------
def _cat_vmem_kernel(x1_ref, x2_ref, o_ref):
    # Lane-dense full-width store: the unaligned seam is handled in-vreg by
    # the concatenate, so the HBM writeback of the block is unmasked.
    o_ref[...] = jnp.concatenate([x1_ref[...], x2_ref[...]], axis=-1)


def _pick_bn(n, mtot, itemsize, budget_bytes):
    """Largest row-block with bn % 8 == 0 (or bn == n) under the VMEM budget."""
    max_bn = max(1, budget_bytes // (mtot * itemsize))
    if n <= max_bn:
        return n
    bn = (max_bn // 8) * 8
    while bn >= 8:
        if n % bn == 0:
            return bn
        bn -= 8
    return n


def _cat_vmem(x1f, x2f, m1, m2, mtot, n, dtype, itemsize, cost):
    # Budget ~4 MiB per block => ~16 MiB with double-buffered in/out, safely
    # under the 32 MiB scoped default on v7x (64 MiB physical).
    bn = _pick_bn(n, mtot, itemsize, budget_bytes=4 << 20)
    vmem_needed = 4 * bn * mtot * itemsize + (2 << 20)
    return pl.pallas_call(
        _cat_vmem_kernel,
        out_shape=jax.ShapeDtypeStruct((n, mtot), dtype),
        grid=(pl.cdiv(n, bn),),
        in_specs=[
            pl.BlockSpec((bn, m1), lambda i: (i, 0)),
            pl.BlockSpec((bn, m2), lambda i: (i, 0)),
        ],
        out_specs=pl.BlockSpec((bn, mtot), lambda i: (i, 0)),
        cost_estimate=cost,
        compiler_params=pltpu.CompilerParams(
            dimension_semantics=("parallel",),
            vmem_limit_bytes=int(min(max(vmem_needed, 32 << 20), 100 << 20)),
        ),
    )(x1f, x2f)


# ----------------------------------------------------------------------------
# Public wrapper: torch.cat((x1, x2), dim=1) for NCHW tensors.
# ----------------------------------------------------------------------------
def cat_channels(x1, x2, *, dma_chunks=4):
    assert x1.ndim == 4 and x2.ndim == 4, "expects NCHW inputs"
    N, C1, H, W = x1.shape
    N2, C2, H2, W2 = x2.shape
    assert (N, H, W) == (N2, H2, W2), "non-concat dims must match"
    assert x1.dtype == x2.dtype, "dtypes must match"

    dtype = x1.dtype
    itemsize = jnp.dtype(dtype).itemsize
    hw = H * W
    m1, m2 = C1 * hw, C2 * hw
    mtot = m1 + m2

    # Free contiguous reshape (row-major NCHW): channel concat becomes a
    # concat along one flat trailing axis -> each input is one rectangular
    # (N x M) window of the output.
    x1f = x1.reshape(N, m1)
    x2f = x2.reshape(N, m2)

    # Pure memory movement: read both inputs once, write the output once.
    bytes_moved = 2 * (x1.size + x2.size) * itemsize
    cost = pl.CostEstimate(flops=0, transcendentals=0, bytes_accessed=bytes_moved)

    if m1 % _LANE == 0:
        out_flat = _cat_dma(
            x1f, x2f, m1, m2, mtot, N, dtype, itemsize, dma_chunks, cost
        )
    else:
        out_flat = _cat_vmem(x1f, x2f, m1, m2, mtot, N, dtype, itemsize, cost)

    return out_flat.reshape(N, C1 + C2, H, W)


if __name__ == "__main__":
    key = jax.random.PRNGKey(0)
    k1, k2, k3, k4 = jax.random.split(key, 4)

    # Case 1: small NCHW inputs (module's typical use), aligned seam -> DMA path.
    x1 = jax.random.normal(k1, (2, 4, 16, 16), dtype=jnp.float32)
    x2 = jax.random.normal(k2, (2, 6, 16, 16), dtype=jnp.float32)
    out = jax.block_until_ready(cat_channels(x1, x2))
    ref = jnp.concatenate((x1, x2), axis=1)
    assert out.shape == (2, 10, 16, 16), out.shape
    assert out.dtype == x1.dtype
    assert jnp.array_equal(out, ref), "mismatch vs jnp.concatenate (case 1)"

    # Case 2: larger batch -> exercises the chunked multi-DMA concurrency path.
    y1 = jax.random.normal(k3, (64, 4, 16, 16), dtype=jnp.float32)
    y2 = jax.random.normal(k4, (64, 6, 16, 16), dtype=jnp.float32)
    out2 = jax.block_until_ready(cat_channels(y1, y2))
    ref2 = jnp.concatenate((y1, y2), axis=1)
    assert out2.shape == (64, 10, 16, 16), out2.shape
    assert jnp.array_equal(out2, ref2), "mismatch vs jnp.concatenate (case 2)"

    print("KERNEL_OK")
</pallas_src>

<mosaic_0001>
module attributes {stable_mosaic.version = 11 : i64} {
  func.func @_cat_dma_kernel(%arg0: memref<2x1024xf32, #tpu.memory_space<any>>, %arg1: memref<2x1536xf32, #tpu.memory_space<any>>, %arg2: memref<2x2560xf32, #tpu.memory_space<any>>, %arg3: memref<2x1x!tpu.dma_semaphore, #tpu.memory_space<semaphore_mem>>) attributes {dimension_semantics = [], scalar_prefetch = 0 : i64, scratch_operands = 1 : i64, tpu.core_type = #tpu.core_type<tc>} {
    %c0_i32 = arith.constant 0 : i32
    %c0_i32_0 = arith.constant 0 : i32
    %c0_i32_1 = arith.constant 0 : i32
    %c0_i32_2 = arith.constant 0 : i32
    %0 = tpu.memref_slice %arg0[%c0_i32_1, %c0_i32_2] : memref<2x1024xf32, #tpu.memory_space<any>> -> memref<2x1024xf32, #tpu.memory_space<any>>
    %c0_i32_3 = arith.constant 0 : i32
    %c0_i32_4 = arith.constant 0 : i32
    %1 = tpu.memref_slice %arg2[%c0_i32_3, %c0_i32_4] : memref<2x2560xf32, #tpu.memory_space<any>> -> memref<2x1024xf32, #tpu.memory_space<any>>
    %2 = tpu.memref_slice %arg3[%c0_i32, %c0_i32_0] : memref<2x1x!tpu.dma_semaphore, #tpu.memory_space<semaphore_mem>> -> memref<1x1x!tpu.dma_semaphore, #tpu.memory_space<semaphore_mem>>
    %3 = tpu.memref_squeeze %2 : memref<1x1x!tpu.dma_semaphore, #tpu.memory_space<semaphore_mem>> -> memref<!tpu.dma_semaphore, #tpu.memory_space<semaphore_mem>>
    tpu.enqueue_dma source(%0 : memref<2x1024xf32, #tpu.memory_space<any>>) target(%1 : memref<2x1024xf32, #tpu.memory_space<any>>) target_semaphore(%3 : memref<!tpu.dma_semaphore, #tpu.memory_space<semaphore_mem>>)
    %c1_i32 = arith.constant 1 : i32
    %c0_i32_5 = arith.constant 0 : i32
    %c0_i32_6 = arith.constant 0 : i32
    %c0_i32_7 = arith.constant 0 : i32
    %4 = tpu.memref_slice %arg1[%c0_i32_6, %c0_i32_7] : memref<2x1536xf32, #tpu.memory_space<any>> -> memref<2x1536xf32, #tpu.memory_space<any>>
    %c0_i32_8 = arith.constant 0 : i32
    %c1024_i32 = arith.constant 1024 : i32
    %5 = tpu.memref_slice %arg2[%c0_i32_8, %c1024_i32] : memref<2x2560xf32, #tpu.memory_space<any>> -> memref<2x1536xf32, #tpu.memory_space<any>>
    %6 = tpu.memref_slice %arg3[%c1_i32, %c0_i32_5] : memref<2x1x!tpu.dma_semaphore, #tpu.memory_space<semaphore_mem>> -> memref<1x1x!tpu.dma_semaphore, #tpu.memory_space<semaphore_mem>>
    %7 = tpu.memref_squeeze %6 : memref<1x1x!tpu.dma_semaphore, #tpu.memory_space<semaphore_mem>> -> memref<!tpu.dma_semaphore, #tpu.memory_space<semaphore_mem>>
    tpu.enqueue_dma source(%4 : memref<2x1536xf32, #tpu.memory_space<any>>) target(%5 : memref<2x1536xf32, #tpu.memory_space<any>>) target_semaphore(%7 : memref<!tpu.dma_semaphore, #tpu.memory_space<semaphore_mem>>)
    %c0_i32_9 = arith.constant 0 : i32
    %c0_i32_10 = arith.constant 0 : i32
    %c0_i32_11 = arith.constant 0 : i32
    %c0_i32_12 = arith.constant 0 : i32
    %8 = tpu.memref_slice %arg0[%c0_i32_11, %c0_i32_12] : memref<2x1024xf32, #tpu.memory_space<any>> -> memref<2x1024xf32, #tpu.memory_space<any>>
    %c0_i32_13 = arith.constant 0 : i32
    %c0_i32_14 = arith.constant 0 : i32
    %9 = tpu.memref_slice %arg2[%c0_i32_13, %c0_i32_14] : memref<2x2560xf32, #tpu.memory_space<any>> -> memref<2x1024xf32, #tpu.memory_space<any>>
    %10 = tpu.memref_slice %arg3[%c0_i32_9, %c0_i32_10] : memref<2x1x!tpu.dma_semaphore, #tpu.memory_space<semaphore_mem>> -> memref<1x1x!tpu.dma_semaphore, #tpu.memory_space<semaphore_mem>>
    %11 = tpu.memref_squeeze %10 : memref<1x1x!tpu.dma_semaphore, #tpu.memory_space<semaphore_mem>> -> memref<!tpu.dma_semaphore, #tpu.memory_space<semaphore_mem>>
    tpu.wait_dma2 semaphore(%11 : memref<!tpu.dma_semaphore, #tpu.memory_space<semaphore_mem>>) src(%8 : memref<2x1024xf32, #tpu.memory_space<any>>) dst(%9 : memref<2x1024xf32, #tpu.memory_space<any>>)
    %c1_i32_15 = arith.constant 1 : i32
    %c0_i32_16 = arith.constant 0 : i32
    %c0_i32_17 = arith.constant 0 : i32
    %c0_i32_18 = arith.constant 0 : i32
    %12 = tpu.memref_slice %arg1[%c0_i32_17, %c0_i32_18] : memref<2x1536xf32, #tpu.memory_space<any>> -> memref<2x1536xf32, #tpu.memory_space<any>>
    %c0_i32_19 = arith.constant 0 : i32
    %c1024_i32_20 = arith.constant 1024 : i32
    %13 = tpu.memref_slice %arg2[%c0_i32_19, %c1024_i32_20] : memref<2x2560xf32, #tpu.memory_space<any>> -> memref<2x1536xf32, #tpu.memory_space<any>>
    %14 = tpu.memref_slice %arg3[%c1_i32_15, %c0_i32_16] : memref<2x1x!tpu.dma_semaphore, #tpu.memory_space<semaphore_mem>> -> memref<1x1x!tpu.dma_semaphore, #tpu.memory_space<semaphore_mem>>
    %15 = tpu.memref_squeeze %14 : memref<1x1x!tpu.dma_semaphore, #tpu.memory_space<semaphore_mem>> -> memref<!tpu.dma_semaphore, #tpu.memory_space<semaphore_mem>>
    tpu.wait_dma2 semaphore(%15 : memref<!tpu.dma_semaphore, #tpu.memory_space<semaphore_mem>>) src(%12 : memref<2x1536xf32, #tpu.memory_space<any>>) dst(%13 : memref<2x1536xf32, #tpu.memory_space<any>>)
    return
  }
}

</mosaic_0001>

<llo_original>
// kernel: tpu_custom_call.1
$region0: #{tpu_custom_call.1}
  #allocation0 [shape = 'u32[]', space=smem, size = 0x4, offset = 0x4, fixed_abs, tag = 'smem constant byte address 0x4 - core index']
  #allocation1 [shape = 'u32[144,128]{1,0:T(1,128)}', space=vmem, size = 0x12000, scoped, tag = 'internal scratch']
  #allocation2 [shape = 's32[2]{0}', space=sflag, size = 0x8, scoped, tag = 'scratch operand']
  #allocation3 [shape = 's32[]', space=sflag, size = 0x4, offset = 0, fixed_abs, tag = 'sflag constant byte address 0x0 - dummy sync flag']
  #allocation4 [shape = 'u32[0]{0}', space=smem, size = 0, offset = 0, fixed_abs, tag = 'smem constant byte address 0x0 - null']
  #allocation5 [shape = 's32[]', space=sflag, size = 0x4, offset = 0, fixed_abs, tag = 'sflag constant byte address 0x0 - dummy sync flag']
  #allocation6 [shape = 'u32[0]{0}', space=smem, size = 0, offset = 0, fixed_abs, tag = 'smem constant byte address 0x0 - null']
  %s0 = inlined_call_operand.hbm [shape: f32[2,1024], index: 0, kind: input, shape index: {}]
  %s1 = inlined_call_operand.hbm [shape: f32[2,1536], index: 1, kind: input, shape index: {}]
  %s2 = inlined_call_operand.hbm [shape: f32[2,2560], index: 2, kind: output, shape index: {}]
  %s3 = sld [smem:[#allocation0]]
  $region2: #{tpu_custom_call.1} parent=0
    _
  %s5 = ssub.s32 1, %s3
  %s6 = scalar_select 0, %s5, %s3
  %s8 = sshll.u32 1, 14
  %s9 = sxor.u32 4294967295, %s8
  %s12 = sshll.u32 3, 24
  %s13 = sxor.u32 4294967295, %s12
  %s14 = sand.u32 0, %s13
  %s16 = sor.u32 %s14, 0
  %19 = dma.general %s0, 256, %s2, [#allocation2], [#allocation3], [#allocation4], %s16, 0
  %s20 = scalar_lea.hbm %s2, 256
  %s21 = scalar_lea.sflag [#allocation2], 1
  %s23 = sshll.u32 1, 14
  %s24 = sxor.u32 4294967295, %s23
  %s27 = sshll.u32 3, 24
  %s28 = sxor.u32 4294967295, %s27
  %s29 = sand.u32 0, %s28
  %s31 = sor.u32 %s29, 0
  %34 = dma.general %s1, 384, %s20, %s21, [#allocation5], [#allocation6], %s31, 0
  %s35 = smul.u32 2, 1
  %s36 = smul.u32 %s35, 8
  %s37 = sshll.u32 %s36, 4
  %38 = dma.done [#allocation2], %s37
  %s39 = smul.u32 %s35, 12
  %s40 = sshll.u32 %s39, 4
  %41 = dma.done %s21, %s40
  %42 = vsyncmov [#allocation2]
  %s43 = vpop.sfrf %42
  %p44 = scmp.eq.s32.totalorder %s43, 0
  %p45 = pneg %p44
  %47 = shalt.err (%p45)
  %s48 = scalar_lea.sflag [#allocation2], 1
  %49 = vsyncmov %s48
  %s50 = vpop.sfrf %49
  %p51 = scmp.eq.s32.totalorder %s50, 0
  %p52 = pneg %p51
  %54 = shalt.err (%p52)

</llo_original>
